<compile_context>
chip_gen: v7x
topology: tpu7x:2x2x1
jax: 0.10.0
libtpu: 0.0.40
codegen_flags: <defaults>
</compile_context>

<pallas_src>
import functools
from math import gcd

import numpy as np
import jax
import jax.numpy as jnp
from jax.experimental import pallas as pl
from jax.experimental.pallas import tpu as pltpu


def _backward_shift_kernel(x_ref, mask_ref, o_ref, *, wt: int):
    """x_ref / o_ref: (TB, Wt) VMEM tiles; mask_ref: (1, Wt) resident mask."""
    x = x_ref[...]
    # Left shift by one lane with wraparound (XLU rotate; Wt-1 == shift of -1).
    rolled = pltpu.roll(x, shift=wt - 1, axis=1)
    # Zero every image-row end: kills the wrapped element and the positions
    # that picked up the first element of the next packed image row.
    # Single VPU multiply against the VMEM-resident {0,1} mask.
    # NOTE: multiply (vs. select) maps NaN/Inf at row ends to NaN; acceptable
    # for activation tensors and saves ~6 VPU ops per vreg.
    o_ref[...] = rolled * mask_ref[...]


def _device_tuning():
    """Returns (default block_bytes, TensorCores per chip)."""
    try:
        kind = jax.devices()[0].device_kind.lower()
    except Exception:
        return 4 * 1024 * 1024, 1
    if "v7" in kind:
        # 2 TCs, 64 MiB VMEM/TC: 8 MiB tiles -> 4 double buffers = 32 MiB.
        return 8 * 1024 * 1024, 2
    if "v6" in kind:
        return 8 * 1024 * 1024, 1
    if "v5" in kind:
        # 2 MiB tiles keep 4 buffers under the 16 MiB scoped-VMEM default.
        return 2 * 1024 * 1024, 1
    return 4 * 1024 * 1024, 1


def backward_shift(x, *, block_bytes=None):
    """Backward (left) shift by one along the last axis with zero fill.

    x: (N, C, H, W) array.  Returns an array of the same shape/dtype.
    """
    N, C, H, W = x.shape
    dtype = x.dtype
    itemsize = jnp.dtype(dtype).itemsize
    rows = N * C * H                        # number of image rows

    default_bytes, num_tc = _device_tuning()
    if block_bytes is None:
        block_bytes = default_bytes

    # ---- lane-dense packing: Wt = k*W, HARD multiple of 128 lanes ----------
    k_min = 128 // gcd(W, 128)              # minimal k with (k*W) % 128 == 0
    max_lanes = 1024                        # keep the roll within ~8 f32 vregs/row
    m_max = max(1, max_lanes // (k_min * W))
    k = None
    for m in range(m_max, 0, -1):           # largest multiple of k_min dividing rows
        cand = m * k_min
        if rows % cand == 0:
            k = cand
            break
    pad_rows = 0
    if k is None:
        # Rare path: no divisor keeps 128-lane density; zero-pad the flattened
        # row axis (one extra copy) rather than emit masked partial stores.
        k = k_min
        pad_rows = (-rows) % k
    wt = k * W
    rows_eff = rows + pad_rows
    R = rows_eff // k

    # ---- row-block size: device-sized tiles, sublane-packing aligned -------
    sub = max(8, 32 // itemsize)            # 8 (f32) / 16 (bf16) / 32 (int8)
    tb = block_bytes // (wt * itemsize)
    TB = max(sub, (tb // sub) * sub)
    if num_tc > 1 and R >= 4 * sub:
        # Keep >= ~4 grid steps so the "parallel" axis actually shards the
        # loop across both v7x TensorCores (per-TC DMA issue capability).
        TB = min(TB, max(sub, (R // 4) // sub * sub))
    if TB >= R:
        TB = R                              # full extent is always legal
    grid = (pl.cdiv(R, TB),)

    # VMEM: 2 in + 2 out double buffers per tile + resident mask + slack.
    vmem_needed = 4 * TB * wt * itemsize + 2 * 8 * wt * itemsize + (2 << 20)
    vmem_limit = vmem_needed if vmem_needed > (16 << 20) else None

    # {0,1} mask in the data dtype: 0 at every image-row end (lane % W == W-1).
    mask_np = (np.arange(wt) % W != W - 1).astype(np.int32)
    mask = jnp.asarray(mask_np, dtype=dtype).reshape(1, wt)

    x_flat = x.reshape(rows, W)
    if pad_rows:
        x_flat = jnp.pad(x_flat, ((0, pad_rows), (0, 0)))
    x2 = x_flat.reshape(R, wt)

    kernel = functools.partial(_backward_shift_kernel, wt=wt)
    out = pl.pallas_call(
        kernel,
        out_shape=jax.ShapeDtypeStruct((R, wt), dtype),
        grid_spec=pltpu.PrefetchScalarGridSpec(
            num_scalar_prefetch=0,
            grid=grid,
            in_specs=[
                pl.BlockSpec((TB, wt), lambda i: (i, 0)),
                pl.BlockSpec((1, wt), lambda i: (0, 0)),   # VMEM-resident mask
            ],
            out_specs=pl.BlockSpec((TB, wt), lambda i: (i, 0)),
        ),
        compiler_params=pltpu.CompilerParams(
            dimension_semantics=("parallel",),
            vmem_limit_bytes=vmem_limit,
        ),
        cost_estimate=pl.CostEstimate(
            flops=0,
            transcendentals=0,
            bytes_accessed=2 * rows_eff * W * itemsize,
        ),
    )(x2, mask)

    out_flat = out.reshape(rows_eff, W)
    if pad_rows:
        out_flat = out_flat[:rows]
    # TODO(synk): for best end-to-end perf, fuse this shift into the consumer
    # conv epilogue so the shifted activation never round-trips HBM.
    return out_flat.reshape(N, C, H, W)


def _reference(x):
    N, C, H, _ = x.shape
    return jnp.concatenate(
        [x[..., 1:], jnp.zeros((N, C, H, 1), dtype=x.dtype)], axis=-1
    )


if __name__ == "__main__":
    key = jax.random.PRNGKey(0)

    # Shapes implied by the module (small): batch=2, channels=4, 16x16 spatial.
    N, C, H, W = 2, 4, 16, 16
    x = jax.random.normal(key, (N, C, H, W), dtype=jnp.float32)
    y = jax.block_until_ready(backward_shift(x))
    assert y.shape == x.shape and y.dtype == x.dtype
    assert jnp.allclose(y, _reference(x)), "mismatch vs reference (test 1)"

    # Exercises a multi-step row-blocked grid (TB < R).
    x2 = jax.random.normal(jax.random.PRNGKey(0), (2, 4, 64, 128), jnp.float32)
    y2 = jax.block_until_ready(backward_shift(x2, block_bytes=64 * 1024))
    assert jnp.allclose(y2, _reference(x2)), "mismatch vs reference (test 2)"

    # bf16 + an awkward width/row-count that exercises the padded-rows path
    # (W=48 -> k_min=8; rows=60 has no multiple-of-8 divisor within the cap).
    x3 = jax.random.normal(jax.random.PRNGKey(0), (2, 3, 10, 48), jnp.bfloat16)
    y3 = jax.block_until_ready(backward_shift(x3))
    assert jnp.allclose(
        y3.astype(jnp.float32), _reference(x3).astype(jnp.float32)
    ), "mismatch vs reference (test 3)"

    print("KERNEL_OK")
</pallas_src>

<mosaic_0001>
module attributes {stable_mosaic.version = 11 : i64} {
  func.func @_backward_shift_kernel(%arg0: i32, %arg1: memref<2x1024xf32, #tpu.memory_space<vmem>>, %arg2: memref<1x1024xf32, #tpu.memory_space<vmem>>, %arg3: memref<2x1024xf32, #tpu.memory_space<vmem>>) attributes {dimension_semantics = [#tpu.dimension_semantics<parallel>], iteration_bounds = array<i64: 1>, scalar_prefetch = 0 : i64, scratch_operands = 0 : i64, tpu.core_type = #tpu.core_type<tc>, window_params = [{transform_indices = @transform_0, window_bounds = array<i64: 2, 1024>}, {pipeline_mode = #tpu.pipeline_mode<synchronous>, transform_indices = @transform_1, window_bounds = array<i64: 1, 1024>}, {transform_indices = @transform_2, window_bounds = array<i64: 2, 1024>}]} {
    %c0 = arith.constant 0 : index
    %c0_0 = arith.constant 0 : index
    %0 = vector.load %arg1[%c0, %c0_0] : memref<2x1024xf32, #tpu.memory_space<vmem>>, vector<2x1024xf32>
    %c1023_i32 = arith.constant 1023 : i32
    %1 = tpu.dynamic_rotate %0 by %c1023_i32 dim 1 : vector<2x1024xf32>, i32 -> vector<2x1024xf32>
    %c0_1 = arith.constant 0 : index
    %c0_2 = arith.constant 0 : index
    %2 = vector.load %arg2[%c0_1, %c0_2] : memref<1x1024xf32, #tpu.memory_space<vmem>>, vector<1x1024xf32>
    %3 = vector.broadcast %2 : vector<1x1024xf32> to vector<2x1024xf32>
    %4 = arith.mulf %1, %3 : vector<2x1024xf32>
    %c0_3 = arith.constant 0 : index
    %c0_4 = arith.constant 0 : index
    %5 = vector.load %arg3[%c0_3, %c0_4] : memref<2x1024xf32, #tpu.memory_space<vmem>>, vector<2x1024xf32>
    tpu.vector_store %arg3[%c0_3, %c0_4], %4 {strides = array<i32>} : memref<2x1024xf32, #tpu.memory_space<vmem>>, vector<2x1024xf32>,
    return
  }
  func.func @transform_0(%arg0: i32) -> (i32, i32) {
    %c0_i32 = arith.constant 0 : i32
    %c0_i32_0 = arith.constant 0 : i32
    return %arg0, %c0_i32 : i32, i32
  }
  func.func @transform_1(%arg0: i32) -> (i32, i32) {
    %c0_i32 = arith.constant 0 : i32
    %c0_i32_0 = arith.constant 0 : i32
    %c0_i32_1 = arith.constant 0 : i32
    return %c0_i32, %c0_i32_0 : i32, i32
  }
  func.func @transform_2(%arg0: i32) -> (i32, i32) {
    %c0_i32 = arith.constant 0 : i32
    %c0_i32_0 = arith.constant 0 : i32
    return %arg0, %c0_i32 : i32, i32
  }
}

</mosaic_0001>

<llo_original>
// kernel: tpu_custom_call.1
$region0: #{tpu_custom_call.1}
  #allocation0 [shape = 'u32[]', space=smem, size = 0x4, offset = 0x4, fixed_abs, tag = 'smem constant byte address 0x4 - core index']
  #allocation1 [shape = 'u32[144,128]{1,0:T(1,128)}', space=vmem, size = 0x12000, scoped, tag = 'internal scratch']
  %s0 = inlined_call_operand.hbm [shape: f32[2,1024], index: 0, kind: input, shape index: {}]
  %s1 = inlined_call_operand.hbm [shape: f32[1,1024], index: 1, kind: input, shape index: {}]
  %s2 = inlined_call_operand.hbm [shape: f32[2,1024], index: 2, kind: output, shape index: {}]
  %s3 = sld [smem:[#allocation0]]
  $region26: #{tpu_custom_call.1} parent=0
    _
  %s5 = ssub.s32 1, %s3
  %s6 = scalar_select 0, %s5, %s3
  $region1: #{tpu_custom_call.1} parent=0
    #allocation2 [shape = 'u8[8192]{0}', space=vmem, size = 0x2000, scoped, tag = 'input window, operand 0, single buffered']
    #allocation3 [shape = 's32[1]{0}', space=sflag, size = 0x4, scoped, tag = 'scoped memory for tpu_custom_call.1']
    #allocation4 [shape = 's32[1]{0}', space=sflag, size = 0x4, scoped, tag = 'scoped memory for tpu_custom_call.1']
    #allocation5 [shape = 'u8[4096]{0}', space=vmem, size = 0x1000, scoped, tag = 'input window, operand 1, single buffered']
    #allocation6 [shape = 's32[1]{0}', space=sflag, size = 0x4, scoped, tag = 'scoped memory for tpu_custom_call.1']
    #allocation7 [shape = 'u8[8192]{0}', space=vmem, size = 0x2000, scoped, tag = 'output window, operand 0, single buffered']
    %7 = vsyncpa [#allocation3], 0
    %8 = vsyncpa [#allocation6], 0
    %9 = vsyncpa [#allocation4], 0
    // Predicated region
    $region2: #{tpu_custom_call.1} parent=1 // pred_check
      _
    $region3: #{tpu_custom_call.1} parent=1 // pred_check_branch
      %11 = sbr.rel (0) target = $region5
    $region4: #{tpu_custom_call.1} parent=1 // pred_region
      %s13 = ssub.s32 256, 256
      %14 = vsyncadd [#allocation3], %s13
      %s16 = sshll.u32 [#allocation2], 4
      %s17 = int_to_ptr.vmem [resolvable:$true] %s16
      %19 = dma.hbm_to_vmem [thread:$0]  %s0, 256, %s17, [#allocation3]
    $region5: #{tpu_custom_call.1} parent=1 // pred_fallthru
      _
    // Predicated region
    $region6: #{tpu_custom_call.1} parent=1 // pred_check
      _
    $region7: #{tpu_custom_call.1} parent=1 // pred_check_branch
      %21 = sbr.rel (0) target = $region9
    $region8: #{tpu_custom_call.1} parent=1 // pred_region
      %s23 = ssub.s32 128, 128
      %24 = vsyncadd [#allocation6], %s23
      %s26 = sshll.u32 [#allocation5], 4
      %s27 = int_to_ptr.vmem [resolvable:$true] %s26
      %29 = dma.hbm_to_vmem [thread:$0]  %s1, 128, %s27, [#allocation6]
    $region9: #{tpu_custom_call.1} parent=1 // pred_fallthru
      _
    // Predicated region
    $region10: #{tpu_custom_call.1} parent=1 // pred_check
      _
    $region11: #{tpu_custom_call.1} parent=1 // pred_check_branch
      %31 = sbr.rel (0) target = $region13
    $region12: #{tpu_custom_call.1} parent=1 // pred_region
      %32 = dma.done [#allocation3], 256
    $region13: #{tpu_custom_call.1} parent=1 // pred_fallthru
      _
    // Predicated region
    $region14: #{tpu_custom_call.1} parent=1 // pred_check
      _
    $region15: #{tpu_custom_call.1} parent=1 // pred_check_branch
      %34 = sbr.rel (0) target = $region17
    $region16: #{tpu_custom_call.1} parent=1 // pred_region
      %35 = dma.done [#allocation6], 128
    $region17: #{tpu_custom_call.1} parent=1 // pred_fallthru
      _
    %v36 = vld [vmem:[#allocation2] sm:$0xff]
    %v37 = vld [vmem:[#allocation2 + $0x8] sm:$0xff]
    %v40 = vcombine.high %v36, %v36
    %v42 = vunpack.c.l.s4 1983009808
    %v43 = vunpack.c.0.s8 %v42
    %v44 = vlaneseq
    %v45 = vshrl.u32 %v44, 7
    %v46 = vsub.s32 %v43, %v45
    %v47 = vrot.slane %v36, %v46
    %v49 = vunpack.c.l.s4 1983009808
    %v50 = vunpack.c.0.s8 %v49
    %v51 = vlaneseq
    %v52 = vshrl.u32 %v51, 7
    %v53 = vsub.s32 %v50, %v52
    %v54 = vrot.slane %v40, %v53
    %v55 = vcombine.high %v47, %v47
    %v56 = vcombine.high %v54, %v54
    %v57 = vcombine.high %v37, %v37
    %v59 = vunpack.c.l.s4 1983009808
    %v60 = vunpack.c.0.s8 %v59
    %v61 = vlaneseq
    %v62 = vshrl.u32 %v61, 7
    %v63 = vsub.s32 %v60, %v62
    %v64 = vrot.slane %v37, %v63
    %v66 = vunpack.c.l.s4 1983009808
    %v67 = vunpack.c.0.s8 %v66
    %v68 = vlaneseq
    %v69 = vshrl.u32 %v68, 7
    %v70 = vsub.s32 %v67, %v69
    %v71 = vrot.slane %v57, %v70
    %v72 = vcombine.high %v64, %v64
    %v73 = vcombine.high %v71, %v71
    %82 = vrot.lane.b32.xlu0 %v47, 127
    %v83 = vpop.permute.xlu0 %82
    %84 = vrot.lane.b32.xlu0 %v55, 127
    %v85 = vpop.permute.xlu0 %84
    %86 = vrot.lane.b32.xlu0 %v54, 127
    %v87 = vpop.permute.xlu0 %86
    %88 = vrot.lane.b32.xlu0 %v56, 127
    %v89 = vpop.permute.xlu0 %88
    %90 = vrot.lane.b32.xlu0 %v64, 127
    %v91 = vpop.permute.xlu0 %90
    %92 = vrot.lane.b32.xlu0 %v72, 127
    %v93 = vpop.permute.xlu0 %92
    %94 = vrot.lane.b32.xlu0 %v71, 127
    %v95 = vpop.permute.xlu0 %94
    %96 = vrot.lane.b32.xlu0 %v73, 127
    %v97 = vpop.permute.xlu0 %96
    %v98 = vlaneseq
    %v99 = vand.u32 %v98, 127
    %vm100 = vcmp.lt.s32.totalorder %v99, 127
    %v101 = vsel %vm100, %v95, %v97
    %v102 = vsel %vm100, %v93, %v95
    %v103 = vsel %vm100, %v91, %v93
    %v104 = vsel %vm100, %v89, %v91
    %v105 = vsel %vm100, %v87, %v89
    %v106 = vsel %vm100, %v85, %v87
    %v107 = vsel %vm100, %v83, %v85
    %v108 = vsel %vm100, %v97, %v83
    %v109 = vld [vmem:[#allocation5] sm:$0xff]
    %v111 = vlaneseq
    %v112 = vshrl.u32 %v111, 7
    %v113 = vsub.s32 0, %v112
    %v114 = vrot.slane %v109, %v113
    %v115 = vlaneseq
    %v116 = vshrl.u32 %v115, 7
    %v117 = vsub.s32 1, %v116
    %v118 = vrot.slane %v109, %v117
    %v119 = vlaneseq
    %v120 = vshrl.u32 %v119, 7
    %v121 = vsub.s32 2, %v120
    %v122 = vrot.slane %v109, %v121
    %v123 = vlaneseq
    %v124 = vshrl.u32 %v123, 7
    %v125 = vsub.s32 3, %v124
    %v126 = vrot.slane %v109, %v125
    %v127 = vlaneseq
    %v128 = vshrl.u32 %v127, 7
    %v129 = vsub.s32 4, %v128
    %v130 = vrot.slane %v109, %v129
    %v131 = vlaneseq
    %v132 = vshrl.u32 %v131, 7
    %v133 = vsub.s32 5, %v132
    %v134 = vrot.slane %v109, %v133
    %v135 = vlaneseq
    %v136 = vshrl.u32 %v135, 7
    %v137 = vsub.s32 6, %v136
    %v138 = vrot.slane %v109, %v137
    %v139 = vlaneseq
    %v140 = vshrl.u32 %v139, 7
    %v141 = vsub.s32 7, %v140
    %v142 = vrot.slane %v109, %v141
    %v151 = vmul.f32 %v107, %v114
    %v152 = vmul.f32 %v106, %v118
    %v153 = vmul.f32 %v105, %v122
    %v154 = vmul.f32 %v104, %v126
    %v155 = vmul.f32 %v103, %v130
    %v156 = vmul.f32 %v102, %v134
    %v157 = vmul.f32 %v101, %v138
    %v158 = vmul.f32 %v108, %v142
    %v167 = vcombine.low %v151, %v152
    %v168 = vcombine.low %v153, %v154
    %v170 = vunpack.c.l.s4 1983009808
    %v171 = vunpack.c.0.s8 %v170
    %v172 = vlaneseq
    %v173 = vshrl.u32 %v172, 7
    %v174 = vsub.s32 %v171, %v173
    %v175 = vrot.slane %v167, %v174
    %v177 = vunpack.c.l.s4 1983009808
    %v178 = vunpack.c.0.s8 %v177
    %v179 = vlaneseq
    %v180 = vshrl.u32 %v179, 7
    %v181 = vsub.s32 %v178, %v180
    %v182 = vrot.slane %v168, %v181
    %v183 = vcombine.low %v175, %v182
    %v184 = vcombine.low %v155, %v156
    %v185 = vcombine.low %v157, %v158
    %v187 = vunpack.c.l.s4 1983009808
    %v188 = vunpack.c.0.s8 %v187
    %v189 = vlaneseq
    %v190 = vshrl.u32 %v189, 7
    %v191 = vsub.s32 %v188, %v190
    %v192 = vrot.slane %v184, %v191
    %v194 = vunpack.c.l.s4 1983009808
    %v195 = vunpack.c.0.s8 %v194
    %v196 = vlaneseq
    %v197 = vshrl.u32 %v196, 7
    %v198 = vsub.s32 %v195, %v197
    %v199 = vrot.slane %v185, %v198
    %v200 = vcombine.low %v192, %v199
    %203 = vst [vmem:[#allocation7] sm:$0xff] %v183
    %204 = vst [vmem:[#allocation7 + $0x8] sm:$0xff] %v200
    // Predicated region
    $region18: #{tpu_custom_call.1} parent=1 // pred_check
      _
    $region19: #{tpu_custom_call.1} parent=1 // pred_check_branch
      %206 = sbr.rel (0) target = $region21
    $region20: #{tpu_custom_call.1} parent=1 // pred_region
      %s208 = ssub.s32 256, 256
      %209 = vsyncadd [#allocation4], %s208
      %s211 = sshll.u32 [#allocation7], 4
      %s212 = int_to_ptr.vmem [resolvable:$true] %s211
      %214 = dma.vmem_to_hbm [thread:$0]  %s212, 256, %s2, [#allocation4]
    $region21: #{tpu_custom_call.1} parent=1 // pred_fallthru
      _
    // Predicated region
    $region22: #{tpu_custom_call.1} parent=1 // pred_check
      _
    $region23: #{tpu_custom_call.1} parent=1 // pred_check_branch
      %216 = sbr.rel (0) target = $region25
    $region24: #{tpu_custom_call.1} parent=1 // pred_region
      %217 = dma.done [#allocation4], 256
    $region25: #{tpu_custom_call.1} parent=1 // pred_fallthru
      _
    %218 = vsyncpa [#allocation3], 1
    %219 = vsyncpa [#allocation6], 1
    %220 = vsyncpa [#allocation4], 1

</llo_original>
